<compile_context>
chip_gen: v7x
topology: tpu7x:2x2x1
jax: 0.10.0
libtpu: 0.0.40
codegen_flags: <defaults>
</compile_context>

<pallas_src>
import math
import jax
import jax.numpy as jnp
from jax.experimental import pallas as pl
from jax.experimental.pallas import tpu as pltpu

LANE = 128      # vreg lane width (last dim)
SUBLANE = 8     # f32 sublane width (second-to-last dim)


def _round_up(x, m):
    return (x + m - 1) // m * m


# ---------------------------------------------------------------------------
# Fused MLP kernel: y = (...((x @ W0^T + b0) @ W1^T + b1) ... ) in one call
# ---------------------------------------------------------------------------
def _make_fused_mlp_kernel(n_layers):
    def kernel(*refs):
        # refs = (x_ref, wt0_ref, b0_ref, wt1_ref, b1_ref, ..., o_ref)
        x_ref = refs[0]
        o_ref = refs[-1]
        h = x_ref[...].astype(jnp.float32)          # (tm, K0)
        for l in range(n_layers):
            wt_ref = refs[1 + 2 * l]                # (Kp, Np) pre-transposed, zero-padded
            b_ref = refs[2 + 2 * l]                 # (1,  Np) zero-padded bias row
            # MXU matmul, f32 accumulation; VPU bias add (broadcast over rows).
            h = jnp.dot(h, wt_ref[...], preferred_element_type=jnp.float32)
            h = h + b_ref[...]                      # padded lanes stay exactly 0
        o_ref[...] = h.astype(o_ref.dtype)
    return kernel


def fused_mlp(x, padded_layers, *, tm=None):
    """Run an entire Linear chain in a single Pallas kernel.

    padded_layers: list of (wt, b2, out_dim):
      wt : (Kp, Np) f32 — W^T, zero-padded so Np is a multiple of 128 and Kp
           matches the (padded) lane width of the previous activation.
      b2 : (1, Np) f32 — zero-padded bias row.
      out_dim: true (unpadded) output width of the layer.
    """
    M, K0 = x.shape
    n_layers = len(padded_layers)
    Np_last = padded_layers[-1][0].shape[1]
    N_last = padded_layers[-1][2]

    if tm is None:
        # Biggest sensible batch tile, capped so VMEM stays tiny; prefer >= 2
        # grid steps when the batch allows it (v7x megacore sharding of the
        # "parallel" axis).  Per-step overhead (~0.35 us) is negligible here.
        tm = min(_round_up(M, SUBLANE), 512)
        if M > SUBLANE and pl.cdiv(M, tm) < 2:
            tm = max(SUBLANE, _round_up(pl.cdiv(M, 2), SUBLANE))
    grid = (pl.cdiv(M, tm),)

    in_specs = [pl.BlockSpec((tm, K0), lambda i: (i, 0))]
    operands = [x]
    for wt, b2, _ in padded_layers:
        Kp, Np = wt.shape
        # Constant index_map -> weights/bias DMA'd once, resident in VMEM.
        in_specs.append(pl.BlockSpec((Kp, Np), lambda i: (0, 0)))
        in_specs.append(pl.BlockSpec((1, Np), lambda i: (0, 0)))
        operands += [wt, b2]

    flops = 2 * M * sum(wt.shape[0] * wt.shape[1] for wt, _, _ in padded_layers)
    bytes_accessed = 4 * (
        M * K0 + M * Np_last
        + sum(wt.size + b2.size for wt, b2, _ in padded_layers))

    out = pl.pallas_call(
        _make_fused_mlp_kernel(n_layers),
        out_shape=jax.ShapeDtypeStruct((M, Np_last), x.dtype),
        grid=grid,
        in_specs=in_specs,
        out_specs=pl.BlockSpec((tm, Np_last), lambda i: (i, 0)),
        compiler_params=pltpu.CompilerParams(
            dimension_semantics=("parallel",)),
        cost_estimate=pl.CostEstimate(
            flops=flops, transcendentals=0, bytes_accessed=bytes_accessed),
    )(*operands)
    # Padded lanes hold exact zeros; strip back to the true output width.
    return out if Np_last == N_last else out[:, :N_last]


# ---------------------------------------------------------------------------
# Deterministic parameter init (mirrors torch.nn.Linear default init)
# ---------------------------------------------------------------------------
def init_linear_params(key, in_dim, out_dim):
    kw, kb = jax.random.split(key)
    bound = 1.0 / math.sqrt(in_dim)
    w = jax.random.uniform(kw, (out_dim, in_dim), jnp.float32, -bound, bound)
    b = jax.random.uniform(kb, (out_dim,), jnp.float32, -bound, bound)
    return w, b


# ---------------------------------------------------------------------------
# ModuleWithSyntheticGradient (forward path)
# ---------------------------------------------------------------------------
class ModuleWithSyntheticGradientPallas:
    """Sequential container of Linear layers; forward == sequential(x),
    executed as a single fused Pallas kernel."""

    def __init__(self):
        self.layers = []                 # list of (wt_padded, b_padded, out_dim)
        self.synthetic_gradient = None   # same representation, one layer

    def _pad_linear(self, w, b, pad_in):
        # w: (out, in) torch layout.  Transpose + lane-dense zero-padding done
        # HERE, once, so the forward hot path carries no layout ops.
        N, K = w.shape
        Np = _round_up(N, LANE)
        Kp = _round_up(K, LANE) if pad_in else K   # layer 0 keeps raw K (matches x)
        wt = jnp.zeros((Kp, Np), jnp.float32).at[:K, :N].set(jnp.transpose(w))
        b2 = jnp.zeros((1, Np), jnp.float32).at[0, :N].set(b)
        return (wt, b2, N)

    def add_linear(self, w, b):
        """add_module(nn.Linear(in, out)) equivalent; layers run sequentially."""
        self.layers.append(self._pad_linear(w, b, pad_in=len(self.layers) > 0))

    def enable_training(self, dim, key):
        # SyntheticGradient(dim, dim) — a single nn.Linear (not used by forward()).
        w, b = init_linear_params(key, dim, dim)
        self.synthetic_gradient = self._pad_linear(w, b, pad_in=False)
        # TODO(synk): train_weight / train_synthetic_grad need autograd + Adam
        # optimizer state updates; only the forward pass is kernelized here.

    def generate_synthetic_gradient(self, x):
        return fused_mlp(x, [self.synthetic_gradient])

    def forward(self, x):
        if not self.layers:              # empty nn.Sequential == identity
            return x
        return fused_mlp(x, self.layers)


# ---------------------------------------------------------------------------
if __name__ == "__main__":
    key = jax.random.PRNGKey(0)
    k_x, k_l0, k_l1, k_sg = jax.random.split(key, 4)

    batch, hidden = 8, 32
    x = jax.random.normal(k_x, (batch, hidden), jnp.float32)

    w0, b0 = init_linear_params(k_l0, hidden, hidden)
    w1, b1 = init_linear_params(k_l1, hidden, hidden)

    module = ModuleWithSyntheticGradientPallas()
    module.add_linear(w0, b0)            # add_module(nn.Linear(hidden, hidden))
    module.add_linear(w1, b1)            # add_module(nn.Linear(hidden, hidden))
    module.enable_training(hidden, k_sg)

    fwd = jax.jit(module.forward)        # one fused pallas_call (+ lane slice)
    out = jax.block_until_ready(fwd(x))

    # Plain-JAX reference of the same sequential chain.
    ref = (x @ w0.T + b0) @ w1.T + b1
    assert out.shape == (batch, hidden)
    assert jnp.allclose(out, ref, atol=1e-4, rtol=1e-4)

    # Synthetic-gradient generator path (also a single fused kernel).
    sg = jax.block_until_ready(jax.jit(module.generate_synthetic_gradient)(out))
    assert sg.shape == (batch, hidden)

    print("KERNEL_OK")
</pallas_src>

<mosaic_0001>
module attributes {stable_mosaic.version = 11 : i64} {
  func.func @kernel(%arg0: i32, %arg1: memref<8x32xf32, #tpu.memory_space<vmem>>, %arg2: memref<32x128xf32, #tpu.memory_space<vmem>>, %arg3: memref<1x128xf32, #tpu.memory_space<vmem>>, %arg4: memref<128x128xf32, #tpu.memory_space<vmem>>, %arg5: memref<1x128xf32, #tpu.memory_space<vmem>>, %arg6: memref<8x128xf32, #tpu.memory_space<vmem>>) attributes {dimension_semantics = [#tpu.dimension_semantics<parallel>], iteration_bounds = array<i64: 1>, scalar_prefetch = 0 : i64, scratch_operands = 0 : i64, tpu.core_type = #tpu.core_type<tc>, window_params = [{transform_indices = @transform_0, window_bounds = array<i64: 8, 32>}, {pipeline_mode = #tpu.pipeline_mode<synchronous>, transform_indices = @transform_1, window_bounds = array<i64: 32, 128>}, {pipeline_mode = #tpu.pipeline_mode<synchronous>, transform_indices = @transform_2, window_bounds = array<i64: 1, 128>}, {pipeline_mode = #tpu.pipeline_mode<synchronous>, transform_indices = @transform_3, window_bounds = array<i64: 128, 128>}, {pipeline_mode = #tpu.pipeline_mode<synchronous>, transform_indices = @transform_4, window_bounds = array<i64: 1, 128>}, {transform_indices = @transform_5, window_bounds = array<i64: 8, 128>}]} {
    %c0 = arith.constant 0 : index
    %c0_0 = arith.constant 0 : index
    %0 = vector.load %arg1[%c0, %c0_0] : memref<8x32xf32, #tpu.memory_space<vmem>>, vector<8x32xf32>
    %c0_1 = arith.constant 0 : index
    %c0_2 = arith.constant 0 : index
    %1 = vector.load %arg2[%c0_1, %c0_2] : memref<32x128xf32, #tpu.memory_space<vmem>>, vector<32x128xf32>
    %cst = arith.constant dense<0.000000e+00> : vector<8x128xf32>
    %2 = tpu.matmul %0, %1, %cst {dimension_numbers = #tpu.dot_dimension_numbers<[1], [0], [0], [1], [0, 0, 1, 1], [], []>} : vector<8x32xf32>, vector<32x128xf32>, vector<8x128xf32> -> vector<8x128xf32>
    %c0_3 = arith.constant 0 : index
    %c0_4 = arith.constant 0 : index
    %3 = vector.load %arg3[%c0_3, %c0_4] : memref<1x128xf32, #tpu.memory_space<vmem>>, vector<1x128xf32>
    %4 = vector.broadcast %3 : vector<1x128xf32> to vector<8x128xf32>
    %5 = arith.addf %2, %4 : vector<8x128xf32>
    %c0_5 = arith.constant 0 : index
    %c0_6 = arith.constant 0 : index
    %6 = vector.load %arg4[%c0_5, %c0_6] : memref<128x128xf32, #tpu.memory_space<vmem>>, vector<128x128xf32>
    %cst_7 = arith.constant dense<0.000000e+00> : vector<8x128xf32>
    %7 = tpu.matmul %5, %6, %cst_7 {dimension_numbers = #tpu.dot_dimension_numbers<[1], [0], [0], [1], [0, 0, 1, 1], [], []>} : vector<8x128xf32>, vector<128x128xf32>, vector<8x128xf32> -> vector<8x128xf32>
    %c0_8 = arith.constant 0 : index
    %c0_9 = arith.constant 0 : index
    %8 = vector.load %arg5[%c0_8, %c0_9] : memref<1x128xf32, #tpu.memory_space<vmem>>, vector<1x128xf32>
    %9 = vector.broadcast %8 : vector<1x128xf32> to vector<8x128xf32>
    %10 = arith.addf %7, %9 : vector<8x128xf32>
    %c0_10 = arith.constant 0 : index
    %c0_11 = arith.constant 0 : index
    %11 = vector.load %arg6[%c0_10, %c0_11] : memref<8x128xf32, #tpu.memory_space<vmem>>, vector<8x128xf32>
    tpu.vector_store %arg6[%c0_10, %c0_11], %10 {strides = array<i32>} : memref<8x128xf32, #tpu.memory_space<vmem>>, vector<8x128xf32>,
    return
  }
  func.func @transform_0(%arg0: i32) -> (i32, i32) {
    %c0_i32 = arith.constant 0 : i32
    %c0_i32_0 = arith.constant 0 : i32
    return %arg0, %c0_i32 : i32, i32
  }
  func.func @transform_1(%arg0: i32) -> (i32, i32) {
    %c0_i32 = arith.constant 0 : i32
    %c0_i32_0 = arith.constant 0 : i32
    %c0_i32_1 = arith.constant 0 : i32
    return %c0_i32, %c0_i32_0 : i32, i32
  }
  func.func @transform_2(%arg0: i32) -> (i32, i32) {
    %c0_i32 = arith.constant 0 : i32
    %c0_i32_0 = arith.constant 0 : i32
    %c0_i32_1 = arith.constant 0 : i32
    return %c0_i32, %c0_i32_0 : i32, i32
  }
  func.func @transform_3(%arg0: i32) -> (i32, i32) {
    %c0_i32 = arith.constant 0 : i32
    %c0_i32_0 = arith.constant 0 : i32
    %c0_i32_1 = arith.constant 0 : i32
    return %c0_i32, %c0_i32_0 : i32, i32
  }
  func.func @transform_4(%arg0: i32) -> (i32, i32) {
    %c0_i32 = arith.constant 0 : i32
    %c0_i32_0 = arith.constant 0 : i32
    %c0_i32_1 = arith.constant 0 : i32
    return %c0_i32, %c0_i32_0 : i32, i32
  }
  func.func @transform_5(%arg0: i32) -> (i32, i32) {
    %c0_i32 = arith.constant 0 : i32
    %c0_i32_0 = arith.constant 0 : i32
    return %arg0, %c0_i32 : i32, i32
  }
}

</mosaic_0001>

<llo_original>
// kernel: forward.1
$region0: #{forward.1}
  #allocation0 [shape = 'u32[]', space=smem, size = 0x4, offset = 0x4, fixed_abs, tag = 'smem constant byte address 0x4 - core index']
  #allocation1 [shape = 'u32[144,128]{1,0:T(1,128)}', space=vmem, size = 0x12000, scoped, tag = 'internal scratch']
  %s0 = inlined_call_operand.hbm [shape: f32[8,32], index: 0, kind: input, shape index: {}]
  %s1 = inlined_call_operand.hbm [shape: f32[32,128], index: 1, kind: input, shape index: {}]
  %s2 = inlined_call_operand.vmem [shape: f32[1,128], index: 2, kind: input, shape index: {}]
  %s3 = inlined_call_operand.hbm [shape: f32[128,128], index: 3, kind: input, shape index: {}]
  %s4 = inlined_call_operand.vmem [shape: f32[1,128], index: 4, kind: input, shape index: {}]
  %s5 = inlined_call_operand.hbm [shape: f32[8,128], index: 5, kind: output, shape index: {}]
  %s6 = sld [smem:[#allocation0]]
  $region42: #{forward.1} parent=0
    _
  %s8 = ssub.s32 1, %s6
  %s9 = scalar_select 0, %s8, %s6
  $region1: #{forward.1} parent=0
    #allocation2 [shape = 'u8[4096]{0}', space=vmem, size = 0x1000, scoped, tag = 'input window, operand 0, single buffered']
    #allocation3 [shape = 's32[1]{0}', space=sflag, size = 0x4, scoped, tag = 'scoped memory for forward.1']
    #allocation4 [shape = 's32[1]{0}', space=sflag, size = 0x4, scoped, tag = 'scoped memory for forward.1']
    #allocation5 [shape = 'u8[16384]{0}', space=vmem, size = 0x4000, scoped, tag = 'input window, operand 1, single buffered']
    #allocation6 [shape = 's32[1]{0}', space=sflag, size = 0x4, scoped, tag = 'scoped memory for forward.1']
    #allocation7 [shape = 'u8[65536]{0}', space=vmem, size = 0x10000, scoped, tag = 'input window, operand 3, single buffered']
    #allocation8 [shape = 'u8[4096]{0}', space=vmem, size = 0x1000, scoped, tag = 'output window, operand 0, single buffered']
    %10 = vsyncpa [#allocation3], 0
    %11 = vsyncpa [#allocation6], 0
    %12 = vsyncpa [#allocation4], 0
    // Predicated region
    $region2: #{forward.1} parent=1 // pred_check
      _
    $region3: #{forward.1} parent=1 // pred_check_branch
      %14 = sbr.rel (0) target = $region5
    $region4: #{forward.1} parent=1 // pred_region
      %s16 = ssub.s32 128, 128
      %17 = vsyncadd [#allocation3], %s16
      %s19 = sshll.u32 [#allocation2], 4
      %s20 = int_to_ptr.vmem [resolvable:$true] %s19
      %22 = dma.hbm_to_vmem [thread:$0]  %s0, 128, %s20, [#allocation3]
    $region5: #{forward.1} parent=1 // pred_fallthru
      _
    // Predicated region
    $region6: #{forward.1} parent=1 // pred_check
      _
    $region7: #{forward.1} parent=1 // pred_check_branch
      %24 = sbr.rel (0) target = $region9
    $region8: #{forward.1} parent=1 // pred_region
      %s26 = ssub.s32 512, 512
      %27 = vsyncadd [#allocation6], %s26
      %s28 = sshll.u32 [#allocation5], 4
      %s29 = int_to_ptr.vmem [resolvable:$true] %s28
      %34 = dma.hbm_to_vmem [thread:$0]  %s1, 512, %s29, [#allocation6], 128, 128, 8
    $region9: #{forward.1} parent=1 // pred_fallthru
      _
    // Predicated region
    $region10: #{forward.1} parent=1 // pred_check
      _
    $region11: #{forward.1} parent=1 // pred_check_branch
      %36 = sbr.rel (0) target = $region13
    $region12: #{forward.1} parent=1 // pred_region
      _
    $region13: #{forward.1} parent=1 // pred_fallthru
      _
    // Predicated region
    $region14: #{forward.1} parent=1 // pred_check
      _
    $region15: #{forward.1} parent=1 // pred_check_branch
      %38 = sbr.rel (0) target = $region17
    $region16: #{forward.1} parent=1 // pred_region
      %s40 = ssub.s32 2048, 2048
      %41 = vsyncadd [#allocation6], %s40
      %s42 = sshll.u32 [#allocation7], 4
      %s43 = int_to_ptr.vmem [resolvable:$true] %s42
      %48 = dma.hbm_to_vmem [thread:$0]  %s3, 2048, %s43, [#allocation6], 128, 128, 8
    $region17: #{forward.1} parent=1 // pred_fallthru
      _
    // Predicated region
    $region18: #{forward.1} parent=1 // pred_check
      _
    $region19: #{forward.1} parent=1 // pred_check_branch
      %50 = sbr.rel (0) target = $region21
    $region20: #{forward.1} parent=1 // pred_region
      _
    $region21: #{forward.1} parent=1 // pred_fallthru
      _
    // Predicated region
    $region22: #{forward.1} parent=1 // pred_check
      _
    $region23: #{forward.1} parent=1 // pred_check_branch
      %52 = sbr.rel (0) target = $region25
    $region24: #{forward.1} parent=1 // pred_region
      %53 = dma.done [#allocation3], 128
    $region25: #{forward.1} parent=1 // pred_fallthru
      _
    // Predicated region
    $region26: #{forward.1} parent=1 // pred_check
      _
    $region27: #{forward.1} parent=1 // pred_check_branch
      %55 = sbr.rel (0) target = $region29
    $region28: #{forward.1} parent=1 // pred_region
      %56 = dma.done [#allocation6], 512
    $region29: #{forward.1} parent=1 // pred_fallthru
      _
    // Predicated region
    $region30: #{forward.1} parent=1 // pred_check
      _
    $region31: #{forward.1} parent=1 // pred_check_branch
      %58 = sbr.rel (0) target = $region33
    $region32: #{forward.1} parent=1 // pred_region
      %59 = dma.done [#allocation6], 2048
    $region33: #{forward.1} parent=1 // pred_fallthru
      _
    %v60 = vld [vmem:[#allocation2] sm:$0xff]
    %v61 = vld [vmem:[#allocation5] sm:$0xff]
    %v62 = vld [vmem:[#allocation5 + $0x8] sm:$0xff]
    %v63 = vld [vmem:[#allocation5 + $0x10] sm:$0xff]
    %v64 = vld [vmem:[#allocation5 + $0x18] sm:$0xff]
    %v65 = vld [vmem:[%s2] sm:$0x1]
    %v67 = vlaneseq
    %v68 = vshrl.u32 %v67, 7
    %v69 = vsub.s32 0, %v68
    %v70 = vrot.slane %v65, %v69
    %vm72 = vcmask 261120
    %v74 = vsel %vm72, %v60, 0
    %76 = vmatprep.subr.mxu0 0.0
    %77 = vmatpush1.msra.mxu0 %v61
    %78 = vmatprep.subr.mxu0 0.0
    %79 = vmatpush1.msra.mxu0 %v62
    %80 = vmatprep.subr.mxu0 0.0
    %81 = vmatpush1.msra.mxu0 %v63
    %82 = vmatprep.subr.mxu0 0.0
    %83 = vmatpush1.msra.mxu0 %v64
    %84 = vmatprep.subr.mxu0 0.0
    %85 = vmatpush1.msra.mxu0 0.0
    %86 = vmatprep.subr.mxu0 0.0
    %87 = vmatpush1.msra.mxu0 0.0
    %88 = vmatprep.subr.mxu0 0.0
    %89 = vmatpush1.msra.mxu0 0.0
    %90 = vmatprep.subr.mxu0 0.0
    %91 = vmatpush1.msra.mxu0 0.0
    %92 = vmatprep.subr.mxu0 0.0
    %93 = vmatpush1.msra.mxu0 0.0
    %94 = vmatprep.subr.mxu0 0.0
    %95 = vmatpush1.msra.mxu0 0.0
    %96 = vmatprep.subr.mxu0 0.0
    %97 = vmatpush1.msra.mxu0 0.0
    %98 = vmatprep.subr.mxu0 0.0
    %99 = vmatpush1.msra.mxu0 0.0
    %100 = vmatprep.subr.mxu0 0.0
    %101 = vmatpush1.msra.mxu0 0.0
    %102 = vmatprep.subr.mxu0 0.0
    %103 = vmatpush1.msra.mxu0 0.0
    %104 = vmatprep.subr.mxu0 0.0
    %105 = vmatpush1.msra.mxu0 0.0
    %106 = vmatprep.subr.mxu0 0.0
    %107 = vmatpush1.msra.mxu0 0.0
    %108 = vmatprep.subr.mxu0 0.0
    %109 = vmatpush1.msra.mxu0 0.0
    %110 = vmatprep.subr.mxu0 0.0
    %111 = vmatpush1.msra.mxu0 0.0
    %112 = vmatprep.subr.mxu0 0.0
    %113 = vmatpush1.msra.mxu0 0.0
    %114 = vmatprep.subr.mxu0 0.0
    %115 = vmatpush1.msra.mxu0 0.0
    %116 = vmatprep.subr.mxu0 0.0
    %117 = vmatpush1.msra.mxu0 0.0
    %118 = vmatprep.subr.mxu0 0.0
    %119 = vmatpush1.msra.mxu0 0.0
    %120 = vmatprep.subr.mxu0 0.0
    %121 = vmatpush1.msra.mxu0 0.0
    %122 = vmatprep.subr.mxu0 0.0
    %123 = vmatpush1.msra.mxu0 0.0
    %124 = vmatprep.subr.mxu0 0.0
    %125 = vmatpush1.msra.mxu0 0.0
    %126 = vmatprep.subr.mxu0 0.0
    %127 = vmatpush1.msra.mxu0 0.0
    %128 = vmatprep.subr.mxu0 0.0
    %129 = vmatpush1.msra.mxu0 0.0
    %130 = vmatprep.subr.mxu0 0.0
    %131 = vmatpush1.msra.mxu0 0.0
    %132 = vmatprep.subr.mxu0 0.0
    %133 = vmatpush1.msra.mxu0 0.0
    %134 = vmatprep.subr.mxu0 0.0
    %135 = vmatpush1.msra.mxu0 0.0
    %136 = vmatprep.subr.mxu0 0.0
    %137 = vmatpush1.msra.mxu0 0.0
    %138 = vmatprep.subr.mxu0 0.0
    %139 = vmatpush1.msra.mxu0 0.0
    %140 = vmatprep.mubr.f32.mxu0 0.0
    %141 = vmatmul.mubr.f32.gmra.mrb[0].mxu0 %v74
    %v142 = vpop.f32.mrb[0].mxu0
    %v143 = vadd.f32 %v70, %v142
    %v144 = vpop.f32.mrb[0].mxu0
    %145 = vdwg.mxu0
    %v146 = vld [vmem:[#allocation7] sm:$0xff]
    %v147 = vld [vmem:[#allocation7 + $0x8] sm:$0xff]
    %v148 = vld [vmem:[#allocation7 + $0x10] sm:$0xff]
    %v149 = vld [vmem:[#allocation7 + $0x18] sm:$0xff]
    %v150 = vld [vmem:[#allocation7 + $0x20] sm:$0xff]
    %v151 = vld [vmem:[#allocation7 + $0x28] sm:$0xff]
    %v152 = vld [vmem:[#allocation7 + $0x30] sm:$0xff]
    %v153 = vld [vmem:[#allocation7 + $0x38] sm:$0xff]
    %v154 = vld [vmem:[#allocation7 + $0x40] sm:$0xff]
    %v155 = vld [vmem:[#allocation7 + $0x48] sm:$0xff]
    %v156 = vld [vmem:[#allocation7 + $0x50] sm:$0xff]
    %v157 = vld [vmem:[#allocation7 + $0x58] sm:$0xff]
    %v158 = vld [vmem:[#allocation7 + $0x60] sm:$0xff]
    %v159 = vld [vmem:[#allocation7 + $0x68] sm:$0xff]
    %v160 = vld [vmem:[#allocation7 + $0x70] sm:$0xff]
    %v161 = vld [vmem:[#allocation7 + $0x78] sm:$0xff]
    %v162 = vld [vmem:[%s4] sm:$0x1]
    %v164 = vlaneseq
    %v165 = vshrl.u32 %v164, 7
    %v166 = vsub.s32 0, %v165
    %v167 = vrot.slane %v162, %v166
    %169 = vmatprep.subr.mxu0 0.0
    %170 = vmatpush1.msra.mxu0 %v146
    %171 = vmatprep.subr.mxu0 0.0
    %172 = vmatpush1.msra.mxu0 %v147
    %173 = vmatprep.subr.mxu0 0.0
    %174 = vmatpush1.msra.mxu0 %v148
    %175 = vmatprep.subr.mxu0 0.0
    %176 = vmatpush1.msra.mxu0 %v149
    %177 = vmatprep.subr.mxu0 0.0
    %178 = vmatpush1.msra.mxu0 %v150
    %179 = vmatprep.subr.mxu0 0.0
    %180 = vmatpush1.msra.mxu0 %v151
    %181 = vmatprep.subr.mxu0 0.0
    %182 = vmatpush1.msra.mxu0 %v152
    %183 = vmatprep.subr.mxu0 0.0
    %184 = vmatpush1.msra.mxu0 %v153
    %185 = vmatprep.subr.mxu0 0.0
    %186 = vmatpush1.msra.mxu0 %v154
    %187 = vmatprep.subr.mxu0 0.0
    %188 = vmatpush1.msra.mxu0 %v155
    %189 = vmatprep.subr.mxu0 0.0
    %190 = vmatpush1.msra.mxu0 %v156
    %191 = vmatprep.subr.mxu0 0.0
    %192 = vmatpush1.msra.mxu0 %v157
    %193 = vmatprep.subr.mxu0 0.0
    %194 = vmatpush1.msra.mxu0 %v158
    %195 = vmatprep.subr.mxu0 0.0
    %196 = vmatpush1.msra.mxu0 %v159
    %197 = vmatprep.subr.mxu0 0.0
    %198 = vmatpush1.msra.mxu0 %v160
    %199 = vmatprep.subr.mxu0 0.0
    %200 = vmatpush1.msra.mxu0 %v161
    %201 = vmatprep.subr.mxu0 0.0
    %202 = vmatpush1.msra.mxu0 0.0
    %203 = vmatprep.subr.mxu0 0.0
    %204 = vmatpush1.msra.mxu0 0.0
    %205 = vmatprep.subr.mxu0 0.0
    %206 = vmatpush1.msra.mxu0 0.0
    %207 = vmatprep.subr.mxu0 0.0
    %208 = vmatpush1.msra.mxu0 0.0
    %209 = vmatprep.subr.mxu0 0.0
    %210 = vmatpush1.msra.mxu0 0.0
    %211 = vmatprep.subr.mxu0 0.0
    %212 = vmatpush1.msra.mxu0 0.0
    %213 = vmatprep.subr.mxu0 0.0
    %214 = vmatpush1.msra.mxu0 0.0
    %215 = vmatprep.subr.mxu0 0.0
    %216 = vmatpush1.msra.mxu0 0.0
    %217 = vmatprep.subr.mxu0 0.0
    %218 = vmatpush1.msra.mxu0 0.0
    %219 = vmatprep.subr.mxu0 0.0
    %220 = vmatpush1.msra.mxu0 0.0
    %221 = vmatprep.subr.mxu0 0.0
    %222 = vmatpush1.msra.mxu0 0.0
    %223 = vmatprep.subr.mxu0 0.0
    %224 = vmatpush1.msra.mxu0 0.0
    %225 = vmatprep.subr.mxu0 0.0
    %226 = vmatpush1.msra.mxu0 0.0
    %227 = vmatprep.subr.mxu0 0.0
    %228 = vmatpush1.msra.mxu0 0.0
    %229 = vmatprep.subr.mxu0 0.0
    %230 = vmatpush1.msra.mxu0 0.0
    %231 = vmatprep.subr.mxu0 0.0
    %232 = vmatpush1.msra.mxu0 0.0
    %233 = vmatprep.mubr.f32.mxu0 0.0
    %234 = vmatmul.mubr.f32.gmra.mrb[0].mxu0 %v143
    %v235 = vpop.f32.mrb[0].mxu0
    %v236 = vadd.f32 %v167, %v235
    %v237 = vpop.f32.mrb[0].mxu0
    %238 = vdwg.mxu0
    %239 = vst [vmem:[#allocation8] sm:$0xff] %v236
    // Predicated region
    $region34: #{forward.1} parent=1 // pred_check
      _
    $region35: #{forward.1} parent=1 // pred_check_branch
      %241 = sbr.rel (0) target = $region37
    $region36: #{forward.1} parent=1 // pred_region
      %s243 = ssub.s32 128, 128
      %244 = vsyncadd [#allocation4], %s243
      %s246 = sshll.u32 [#allocation8], 4
      %s247 = int_to_ptr.vmem [resolvable:$true] %s246
      %249 = dma.vmem_to_hbm [thread:$0]  %s247, 128, %s5, [#allocation4]
    $region37: #{forward.1} parent=1 // pred_fallthru
      _
    // Predicated region
    $region38: #{forward.1} parent=1 // pred_check
      _
    $region39: #{forward.1} parent=1 // pred_check_branch
      %251 = sbr.rel (0) target = $region41
    $region40: #{forward.1} parent=1 // pred_region
      %252 = dma.done [#allocation4], 128
    $region41: #{forward.1} parent=1 // pred_fallthru
      _
    %253 = vsyncpa [#allocation3], 1
    %254 = vsyncpa [#allocation6], 1
    %255 = vsyncpa [#allocation4], 1

</llo_original>
